<compile_context>
chip_gen: v6e
topology: v6e:2x2x1
jax: 0.10.0
libtpu: 0.0.40
codegen_flags: <defaults>
</compile_context>

<pallas_src>
import functools

import jax
import jax.numpy as jnp
from jax.experimental import pallas as pl
from jax.experimental.pallas import tpu as pltpu


def _round_up(n, m):
    return ((n + m - 1) // m) * m


def _pick_hw_tile(n_rows, hw, bytes_per_elem=4, max_block_bytes=2 << 20):
    """Widest multiple-of-128 lane tile keeping an (n_rows, tile) block small."""
    hw_128 = _round_up(hw, 128)
    cap = max(128, (max_block_bytes // (n_rows * bytes_per_elem)) // 128 * 128)
    return min(hw_128, cap, 2048)


def _pool_gate_kernel(x_ref, w1_ref, b1_ref, w2_ref, b2_ref, gate_ref, acc_ref,
                      *, inv_hw):
    # x_ref: (B, C, hw_tile); w1: (C, Cr); b1: (1, Cr); w2: (Cr, C); b2: (1, C)
    k = pl.program_id(0)

    @pl.when(k == 0)
    def _():
        acc_ref[...] = jnp.zeros_like(acc_ref)

    # Accumulate spatial sums for this tile (zero-padded tail contributes 0).
    acc_ref[...] += jnp.sum(x_ref[...], axis=-1)          # (B, C)

    @pl.when(k == pl.num_programs(0) - 1)
    def _():
        pooled = acc_ref[...] * inv_hw                    # mean over true HW
        h = jnp.dot(pooled, w1_ref[...],
                    preferred_element_type=jnp.float32) + b1_ref[...]
        h = jnp.maximum(h, 0.0)
        z = jnp.dot(h, w2_ref[...],
                    preferred_element_type=jnp.float32) + b2_ref[...]
        gate_ref[...] = 1.0 / (1.0 + jnp.exp(-z))         # sigmoid, (B, C)


def _scale_kernel(x_ref, gate_ref, o_ref):
    # x_ref: (B*C, hw_tile); gate_ref: (B*C, 1) -> per-row broadcast multiply.
    o_ref[...] = x_ref[...] * gate_ref[...]


def se_layer(x, w1, b1, w2, b2):
    """x: (B, C, H, W) float32. Returns (B, C, H, W) float32."""
    B, C, H, W = x.shape
    Cr = w1.shape[1]
    HW = H * W
    BC = B * C

    hw_tile = _pick_hw_tile(BC, HW)
    HW_pad = _round_up(HW, hw_tile)
    n_hw = HW_pad // hw_tile

    x3 = x.reshape(B, C, HW)
    if HW_pad != HW:
        x3 = jnp.pad(x3, ((0, 0), (0, 0), (0, HW_pad - HW)))

    b1_2d = b1.reshape(1, Cr)
    b2_2d = b2.reshape(1, C)

    vmem_limit = 32 * 1024 * 1024

    # ---- Pass 1: pooled mean + excitation gate (reduction over HW tiles) ----
    gate = pl.pallas_call(
        functools.partial(_pool_gate_kernel, inv_hw=1.0 / HW),
        out_shape=jax.ShapeDtypeStruct((B, C), jnp.float32),
        grid=(n_hw,),
        in_specs=[
            pl.BlockSpec((B, C, hw_tile), lambda k: (0, 0, k)),
            pl.BlockSpec((C, Cr), lambda k: (0, 0)),
            pl.BlockSpec((1, Cr), lambda k: (0, 0)),
            pl.BlockSpec((Cr, C), lambda k: (0, 0)),
            pl.BlockSpec((1, C), lambda k: (0, 0)),
        ],
        out_specs=pl.BlockSpec((B, C), lambda k: (0, 0)),
        scratch_shapes=[pltpu.VMEM((B, C), jnp.float32)],
        compiler_params=pltpu.CompilerParams(
            dimension_semantics=("arbitrary",),
            vmem_limit_bytes=vmem_limit),
    )(x3, w1, b1_2d, w2, b2_2d)

    # ---- Pass 2: stream x through, scaling each row by its channel gate ----
    x2 = x3.reshape(BC, HW_pad)
    gate2 = gate.reshape(BC, 1)

    out2 = pl.pallas_call(
        _scale_kernel,
        out_shape=jax.ShapeDtypeStruct((BC, HW_pad), jnp.float32),
        grid=(n_hw,),
        in_specs=[
            pl.BlockSpec((BC, hw_tile), lambda j: (0, j)),
            pl.BlockSpec((BC, 1), lambda j: (0, 0)),
        ],
        out_specs=pl.BlockSpec((BC, hw_tile), lambda j: (0, j)),
        compiler_params=pltpu.CompilerParams(
            dimension_semantics=("parallel",),
            vmem_limit_bytes=vmem_limit),
    )(x2, gate2)

    return out2[:, :HW].reshape(B, C, H, W)


def _reference(x, w1, b1, w2, b2):
    pooled = jnp.mean(x, axis=(2, 3))                     # (B, C)
    h = jnp.maximum(pooled @ w1 + b1, 0.0)
    y = jax.nn.sigmoid(h @ w2 + b2)
    return x * y[:, :, None, None]


if __name__ == "__main__":
    # Module config: channel=64, reduction=16 -> hidden = 4
    B, C, H, W = 2, 64, 16, 16
    reduction = 16
    Cr = C // reduction

    key = jax.random.PRNGKey(0)
    kx, kw1, kb1, kw2, kb2 = jax.random.split(key, 5)

    x = jax.random.normal(kx, (B, C, H, W), dtype=jnp.float32)
    # Linear(C->Cr) then Linear(Cr->C), stored as (in, out) so kernel does x @ W + b.
    w1 = jax.random.normal(kw1, (C, Cr), dtype=jnp.float32) * 0.1
    b1 = jax.random.normal(kb1, (Cr,), dtype=jnp.float32) * 0.1
    w2 = jax.random.normal(kw2, (Cr, C), dtype=jnp.float32) * 0.1
    b2 = jax.random.normal(kb2, (C,), dtype=jnp.float32) * 0.1

    out = se_layer(x, w1, b1, w2, b2)
    jax.block_until_ready(out)

    ref = _reference(x, w1, b1, w2, b2)
    assert out.shape == (B, C, H, W)
    assert jnp.allclose(out, ref, atol=1e-5, rtol=1e-5), "mismatch vs reference"

    print("KERNEL_OK")
</pallas_src>

<mosaic_0001>
module attributes {stable_mosaic.version = 11 : i64} {
  func.func @_pool_gate_kernel(%arg0: i32, %arg1: memref<2x64x256xf32, #tpu.memory_space<vmem>>, %arg2: memref<64x4xf32, #tpu.memory_space<vmem>>, %arg3: memref<1x4xf32, #tpu.memory_space<vmem>>, %arg4: memref<4x64xf32, #tpu.memory_space<vmem>>, %arg5: memref<1x64xf32, #tpu.memory_space<vmem>>, %arg6: memref<2x64xf32, #tpu.memory_space<vmem>>, %arg7: memref<2x64xf32, #tpu.memory_space<vmem>>) attributes {dimension_semantics = [#tpu.dimension_semantics<arbitrary>], iteration_bounds = array<i64: 1>, scalar_prefetch = 0 : i64, scratch_operands = 1 : i64, tpu.core_type = #tpu.core_type<tc>, window_params = [{transform_indices = @transform_0, window_bounds = array<i64: 2, 64, 256>}, {pipeline_mode = #tpu.pipeline_mode<synchronous>, transform_indices = @transform_1, window_bounds = array<i64: 64, 4>}, {pipeline_mode = #tpu.pipeline_mode<synchronous>, transform_indices = @transform_2, window_bounds = array<i64: 1, 4>}, {pipeline_mode = #tpu.pipeline_mode<synchronous>, transform_indices = @transform_3, window_bounds = array<i64: 4, 64>}, {pipeline_mode = #tpu.pipeline_mode<synchronous>, transform_indices = @transform_4, window_bounds = array<i64: 1, 64>}, {pipeline_mode = #tpu.pipeline_mode<synchronous>, transform_indices = @transform_5, window_bounds = array<i64: 2, 64>}]} {
    %c0_i32 = arith.constant 0 : i32
    %0 = arith.cmpi eq, %arg0, %c0_i32 : i32
    %1 = arith.extui %0 : i1 to i32
    %c0_i32_0 = arith.constant 0 : i32
    %2 = arith.cmpi ne, %1, %c0_i32_0 : i32
    scf.if %2 {
      %cst_9 = arith.constant 0.000000e+00 : f32
      %11 = vector.broadcast %cst_9 : f32 to vector<2x64xf32>
      %c0_10 = arith.constant 0 : index
      %c0_11 = arith.constant 0 : index
      %12 = vector.load %arg7[%c0_10, %c0_11] : memref<2x64xf32, #tpu.memory_space<vmem>>, vector<2x64xf32>
      tpu.vector_store %arg7[%c0_10, %c0_11], %11 {strides = array<i32>} : memref<2x64xf32, #tpu.memory_space<vmem>>, vector<2x64xf32>,
    } else {
    }
    %c0 = arith.constant 0 : index
    %c0_1 = arith.constant 0 : index
    %3 = vector.load %arg7[%c0, %c0_1] : memref<2x64xf32, #tpu.memory_space<vmem>>, vector<2x64xf32>
    %c0_2 = arith.constant 0 : index
    %c0_3 = arith.constant 0 : index
    %c0_4 = arith.constant 0 : index
    %4 = vector.load %arg1[%c0_2, %c0_3, %c0_4] : memref<2x64x256xf32, #tpu.memory_space<vmem>>, vector<2x64x256xf32>
    %cst = arith.constant dense<0.000000e+00> : vector<2x64xf32>
    %5 = vector.multi_reduction <add>, %4, %cst [2] : vector<2x64x256xf32> to vector<2x64xf32>
    %6 = arith.addf %3, %5 : vector<2x64xf32>
    %c0_5 = arith.constant 0 : index
    %c0_6 = arith.constant 0 : index
    %7 = vector.load %arg7[%c0_5, %c0_6] : memref<2x64xf32, #tpu.memory_space<vmem>>, vector<2x64xf32>
    tpu.vector_store %arg7[%c0_5, %c0_6], %6 {strides = array<i32>} : memref<2x64xf32, #tpu.memory_space<vmem>>, vector<2x64xf32>,
    %c0_i32_7 = arith.constant 0 : i32
    %8 = arith.cmpi eq, %arg0, %c0_i32_7 : i32
    %9 = arith.extui %8 : i1 to i32
    %c0_i32_8 = arith.constant 0 : i32
    %10 = arith.cmpi ne, %9, %c0_i32_8 : i32
    scf.if %10 {
      %c0_9 = arith.constant 0 : index
      %c0_10 = arith.constant 0 : index
      %11 = vector.load %arg7[%c0_9, %c0_10] : memref<2x64xf32, #tpu.memory_space<vmem>>, vector<2x64xf32>
      %cst_11 = arith.constant 3.906250e-03 : f32
      %12 = vector.broadcast %cst_11 : f32 to vector<2x64xf32>
      %13 = arith.mulf %11, %12 : vector<2x64xf32>
      %c0_12 = arith.constant 0 : index
      %c0_13 = arith.constant 0 : index
      %14 = vector.load %arg2[%c0_12, %c0_13] : memref<64x4xf32, #tpu.memory_space<vmem>>, vector<64x4xf32>
      %cst_14 = arith.constant dense<0.000000e+00> : vector<2x4xf32>
      %15 = tpu.matmul %13, %14, %cst_14 {dimension_numbers = #tpu.dot_dimension_numbers<[1], [0], [0], [1], [0, 0, 1, 1], [], []>} : vector<2x64xf32>, vector<64x4xf32>, vector<2x4xf32> -> vector<2x4xf32>
      %c0_15 = arith.constant 0 : index
      %c0_16 = arith.constant 0 : index
      %16 = vector.load %arg3[%c0_15, %c0_16] : memref<1x4xf32, #tpu.memory_space<vmem>>, vector<1x4xf32>
      %17 = vector.broadcast %16 : vector<1x4xf32> to vector<2x4xf32>
      %18 = arith.addf %15, %17 : vector<2x4xf32>
      %cst_17 = arith.constant 0.000000e+00 : f32
      %19 = vector.broadcast %cst_17 : f32 to vector<2x4xf32>
      %20 = arith.maximumf %18, %19 : vector<2x4xf32>
      %c0_18 = arith.constant 0 : index
      %c0_19 = arith.constant 0 : index
      %21 = vector.load %arg4[%c0_18, %c0_19] : memref<4x64xf32, #tpu.memory_space<vmem>>, vector<4x64xf32>
      %cst_20 = arith.constant dense<0.000000e+00> : vector<2x64xf32>
      %22 = tpu.matmul %20, %21, %cst_20 {dimension_numbers = #tpu.dot_dimension_numbers<[1], [0], [0], [1], [0, 0, 1, 1], [], []>} : vector<2x4xf32>, vector<4x64xf32>, vector<2x64xf32> -> vector<2x64xf32>
      %c0_21 = arith.constant 0 : index
      %c0_22 = arith.constant 0 : index
      %23 = vector.load %arg5[%c0_21, %c0_22] : memref<1x64xf32, #tpu.memory_space<vmem>>, vector<1x64xf32>
      %24 = vector.broadcast %23 : vector<1x64xf32> to vector<2x64xf32>
      %25 = arith.addf %22, %24 : vector<2x64xf32>
      %cst_23 = arith.constant 0.000000e+00 : f32
      %26 = vector.broadcast %cst_23 : f32 to vector<2x64xf32>
      %27 = arith.subf %26, %25 : vector<2x64xf32>
      %28 = math.exp %27 : vector<2x64xf32>
      %cst_24 = arith.constant 1.000000e+00 : f32
      %29 = vector.broadcast %cst_24 : f32 to vector<2x64xf32>
      %30 = arith.addf %29, %28 : vector<2x64xf32>
      %cst_25 = arith.constant 1.000000e+00 : f32
      %31 = vector.broadcast %cst_25 : f32 to vector<2x64xf32>
      %32 = arith.divf %31, %30 : vector<2x64xf32>
      %c0_26 = arith.constant 0 : index
      %c0_27 = arith.constant 0 : index
      %33 = vector.load %arg6[%c0_26, %c0_27] : memref<2x64xf32, #tpu.memory_space<vmem>>, vector<2x64xf32>
      tpu.vector_store %arg6[%c0_26, %c0_27], %32 {strides = array<i32>} : memref<2x64xf32, #tpu.memory_space<vmem>>, vector<2x64xf32>,
    } else {
    }
    return
  }
  func.func @transform_0(%arg0: i32) -> (i32, i32, i32) {
    %c0_i32 = arith.constant 0 : i32
    %c0_i32_0 = arith.constant 0 : i32
    %c0_i32_1 = arith.constant 0 : i32
    return %c0_i32, %c0_i32_0, %arg0 : i32, i32, i32
  }
  func.func @transform_1(%arg0: i32) -> (i32, i32) {
    %c0_i32 = arith.constant 0 : i32
    %c0_i32_0 = arith.constant 0 : i32
    %c0_i32_1 = arith.constant 0 : i32
    return %c0_i32, %c0_i32_0 : i32, i32
  }
  func.func @transform_2(%arg0: i32) -> (i32, i32) {
    %c0_i32 = arith.constant 0 : i32
    %c0_i32_0 = arith.constant 0 : i32
    %c0_i32_1 = arith.constant 0 : i32
    return %c0_i32, %c0_i32_0 : i32, i32
  }
  func.func @transform_3(%arg0: i32) -> (i32, i32) {
    %c0_i32 = arith.constant 0 : i32
    %c0_i32_0 = arith.constant 0 : i32
    %c0_i32_1 = arith.constant 0 : i32
    return %c0_i32, %c0_i32_0 : i32, i32
  }
  func.func @transform_4(%arg0: i32) -> (i32, i32) {
    %c0_i32 = arith.constant 0 : i32
    %c0_i32_0 = arith.constant 0 : i32
    %c0_i32_1 = arith.constant 0 : i32
    return %c0_i32, %c0_i32_0 : i32, i32
  }
  func.func @transform_5(%arg0: i32) -> (i32, i32) {
    %c0_i32 = arith.constant 0 : i32
    %c0_i32_0 = arith.constant 0 : i32
    %c0_i32_1 = arith.constant 0 : i32
    return %c0_i32, %c0_i32_0 : i32, i32
  }
}

</mosaic_0001>

<llo_original>
// kernel: tpu_custom_call.1
$region0: #{tpu_custom_call.1}
  #allocation0 [shape = 'u32[]', space=smem, size = 0x4, offset = 0x4, fixed_abs, tag = 'smem constant byte address 0x4 - core index']
  #allocation1 [shape = 'u32[144,128]{1,0:T(1,128)}', space=vmem, size = 0x12000, scoped, tag = 'internal scratch']
  #allocation2 [shape = 'f32[2,64]{1,0:T(2,128)}', space=vmem, size = 0x400, scoped, tag = 'scratch operand']
  %s0 = inlined_call_operand.hbm [shape: f32[2,64,256], index: 0, kind: input, shape index: {}]
  %s1 = inlined_call_operand.vmem [shape: f32[64,4], index: 1, kind: input, shape index: {}]
  %s2 = inlined_call_operand.vmem [shape: f32[1,4], index: 2, kind: input, shape index: {}]
  %s3 = inlined_call_operand.vmem [shape: f32[4,64], index: 3, kind: input, shape index: {}]
  %s4 = inlined_call_operand.vmem [shape: f32[1,64], index: 4, kind: input, shape index: {}]
  %s5 = inlined_call_operand.hbm [shape: f32[2,64], index: 5, kind: output, shape index: {}]
  %s6 = sld [smem:[#allocation0]]
  $region42: #{tpu_custom_call.1} parent=0
    _
  %s8 = ssub.s32 1, %s6
  %s9 = scalar_select 0, %s8, %s6
  $region1: #{tpu_custom_call.1} parent=0
    #allocation3 [shape = 'u8[131072]{0}', space=vmem, size = 0x20000, scoped, tag = 'input window, operand 0, single buffered']
    #allocation4 [shape = 's32[1]{0}', space=sflag, size = 0x4, scoped, tag = 'scoped memory for tpu_custom_call.1']
    #allocation5 [shape = 's32[1]{0}', space=sflag, size = 0x4, scoped, tag = 'scoped memory for tpu_custom_call.1']
    #allocation6 [shape = 'u8[1024]{0}', space=vmem, size = 0x400, scoped, tag = 'output window, operand 0, single buffered']
    %10 = vsyncpa [#allocation4], 0
    %11 = vsyncpa [#allocation5], 0
    // Predicated region
    $region2: #{tpu_custom_call.1} parent=1 // pred_check
      _
    $region3: #{tpu_custom_call.1} parent=1 // pred_check_branch
      %13 = sbr.rel (0) target = $region5
    $region4: #{tpu_custom_call.1} parent=1 // pred_region
      %s15 = ssub.s32 4096, 4096
      %16 = vsyncadd [#allocation4], %s15
      %s17 = sshll.u32 [#allocation3], 4
      %s18 = int_to_ptr.vmem [resolvable:$true] %s17
      %23 = dma.hbm_to_vmem [thread:$0]  %s0, 4096, %s18, [#allocation4], 256, 256, 16
    $region5: #{tpu_custom_call.1} parent=1 // pred_fallthru
      _
    // Predicated region
    $region6: #{tpu_custom_call.1} parent=1 // pred_check
      _
    $region7: #{tpu_custom_call.1} parent=1 // pred_check_branch
      %25 = sbr.rel (0) target = $region9
    $region8: #{tpu_custom_call.1} parent=1 // pred_region
      _
    $region9: #{tpu_custom_call.1} parent=1 // pred_fallthru
      _
    // Predicated region
    $region10: #{tpu_custom_call.1} parent=1 // pred_check
      _
    $region11: #{tpu_custom_call.1} parent=1 // pred_check_branch
      %27 = sbr.rel (0) target = $region13
    $region12: #{tpu_custom_call.1} parent=1 // pred_region
      _
    $region13: #{tpu_custom_call.1} parent=1 // pred_fallthru
      _
    // Predicated region
    $region14: #{tpu_custom_call.1} parent=1 // pred_check
      _
    $region15: #{tpu_custom_call.1} parent=1 // pred_check_branch
      %29 = sbr.rel (0) target = $region17
    $region16: #{tpu_custom_call.1} parent=1 // pred_region
      _
    $region17: #{tpu_custom_call.1} parent=1 // pred_fallthru
      _
    // Predicated region
    $region18: #{tpu_custom_call.1} parent=1 // pred_check
      _
    $region19: #{tpu_custom_call.1} parent=1 // pred_check_branch
      %31 = sbr.rel (0) target = $region21
    $region20: #{tpu_custom_call.1} parent=1 // pred_region
      _
    $region21: #{tpu_custom_call.1} parent=1 // pred_fallthru
      _
    // Predicated region
    $region22: #{tpu_custom_call.1} parent=1 // pred_check
      _
    $region23: #{tpu_custom_call.1} parent=1 // pred_check_branch
      %33 = sbr.rel (0) target = $region25
    $region24: #{tpu_custom_call.1} parent=1 // pred_region
      %34 = dma.done [#allocation4], 4096
    $region25: #{tpu_custom_call.1} parent=1 // pred_fallthru
      _
    %p35 = scmp.eq.s32.totalorder 0, 0
    // Predicated region
    $region26: #{tpu_custom_call.1} parent=1 // pred_check
      %p36 = pneg %p35
    $region27: #{tpu_custom_call.1} parent=1 // pred_check_branch
      %38 = sbr.rel (%p36) target = $region29
    $region28: #{tpu_custom_call.1} parent=1 // pred_region
      %vm39 = vcmask 517120
      %40 = vst.msk [vmem:[#allocation2] sm:$0x3] %vm39, 0.0
    $region29: #{tpu_custom_call.1} parent=1 // pred_fallthru
      _
    %v41 = vld [vmem:[#allocation2] sm:$0x3]
    %v42 = vld [vmem:[#allocation3] sm:$0xff]
    %v43 = vld [vmem:[#allocation3 + $0x8] sm:$0xff]
    %v44 = vld [vmem:[#allocation3 + $0x10] sm:$0xff]
    %v45 = vld [vmem:[#allocation3 + $0x18] sm:$0xff]
    %v46 = vld [vmem:[#allocation3 + $0x20] sm:$0xff]
    %v47 = vld [vmem:[#allocation3 + $0x28] sm:$0xff]
    %v48 = vld [vmem:[#allocation3 + $0x30] sm:$0xff]
    %v49 = vld [vmem:[#allocation3 + $0x38] sm:$0xff]
    %v50 = vld [vmem:[#allocation3 + $0x40] sm:$0xff]
    %v51 = vld [vmem:[#allocation3 + $0x48] sm:$0xff]
    %v52 = vld [vmem:[#allocation3 + $0x50] sm:$0xff]
    %v53 = vld [vmem:[#allocation3 + $0x58] sm:$0xff]
    %v54 = vld [vmem:[#allocation3 + $0x60] sm:$0xff]
    %v55 = vld [vmem:[#allocation3 + $0x68] sm:$0xff]
    %v56 = vld [vmem:[#allocation3 + $0x70] sm:$0xff]
    %v57 = vld [vmem:[#allocation3 + $0x78] sm:$0xff]
    %v58 = vld [vmem:[#allocation3 + $0x80] sm:$0xff]
    %v59 = vld [vmem:[#allocation3 + $0x88] sm:$0xff]
    %v60 = vld [vmem:[#allocation3 + $0x90] sm:$0xff]
    %v61 = vld [vmem:[#allocation3 + $0x98] sm:$0xff]
    %v62 = vld [vmem:[#allocation3 + $0xa0] sm:$0xff]
    %v63 = vld [vmem:[#allocation3 + $0xa8] sm:$0xff]
    %v64 = vld [vmem:[#allocation3 + $0xb0] sm:$0xff]
    %v65 = vld [vmem:[#allocation3 + $0xb8] sm:$0xff]
    %v66 = vld [vmem:[#allocation3 + $0xc0] sm:$0xff]
    %v67 = vld [vmem:[#allocation3 + $0xc8] sm:$0xff]
    %v68 = vld [vmem:[#allocation3 + $0xd0] sm:$0xff]
    %v69 = vld [vmem:[#allocation3 + $0xd8] sm:$0xff]
    %v70 = vld [vmem:[#allocation3 + $0xe0] sm:$0xff]
    %v71 = vld [vmem:[#allocation3 + $0xe8] sm:$0xff]
    %v72 = vld [vmem:[#allocation3 + $0xf0] sm:$0xff]
    %v73 = vld [vmem:[#allocation3 + $0xf8] sm:$0xff]
    %v74 = vadd.f32 %v42, %v43
    %75 = vadd.xlane.f32.xlu0 %v74
    %v76 = vpop.xlane.xlu0 %75
    %v77 = vadd.f32 %v44, %v45
    %78 = vadd.xlane.f32.xlu0 %v77
    %v79 = vpop.xlane.xlu0 %78
    %v80 = vadd.f32 %v46, %v47
    %81 = vadd.xlane.f32.xlu0 %v80
    %v82 = vpop.xlane.xlu0 %81
    %v83 = vadd.f32 %v48, %v49
    %84 = vadd.xlane.f32.xlu0 %v83
    %v85 = vpop.xlane.xlu0 %84
    %v86 = vadd.f32 %v50, %v51
    %87 = vadd.xlane.f32.xlu0 %v86
    %v88 = vpop.xlane.xlu0 %87
    %v89 = vadd.f32 %v52, %v53
    %90 = vadd.xlane.f32.xlu0 %v89
    %v91 = vpop.xlane.xlu0 %90
    %v92 = vadd.f32 %v54, %v55
    %93 = vadd.xlane.f32.xlu0 %v92
    %v94 = vpop.xlane.xlu0 %93
    %v95 = vadd.f32 %v56, %v57
    %96 = vadd.xlane.f32.xlu0 %v95
    %v97 = vpop.xlane.xlu0 %96
    %v98 = vadd.f32 %v58, %v59
    %99 = vadd.xlane.f32.xlu0 %v98
    %v100 = vpop.xlane.xlu0 %99
    %v101 = vadd.f32 %v60, %v61
    %102 = vadd.xlane.f32.xlu0 %v101
    %v103 = vpop.xlane.xlu0 %102
    %v104 = vadd.f32 %v62, %v63
    %105 = vadd.xlane.f32.xlu0 %v104
    %v106 = vpop.xlane.xlu0 %105
    %v107 = vadd.f32 %v64, %v65
    %108 = vadd.xlane.f32.xlu0 %v107
    %v109 = vpop.xlane.xlu0 %108
    %v110 = vadd.f32 %v66, %v67
    %111 = vadd.xlane.f32.xlu0 %v110
    %v112 = vpop.xlane.xlu0 %111
    %v113 = vadd.f32 %v68, %v69
    %114 = vadd.xlane.f32.xlu0 %v113
    %v115 = vpop.xlane.xlu0 %114
    %v116 = vadd.f32 %v70, %v71
    %117 = vadd.xlane.f32.xlu0 %v116
    %v118 = vpop.xlane.xlu0 %117
    %v119 = vadd.f32 %v72, %v73
    %120 = vadd.xlane.f32.xlu0 %v119
    %v121 = vpop.xlane.xlu0 %120
    %v138 = vlaneseq
    %v139 = vand.u32 %v138, 127
    %v140 = vlaneseq
    %v141 = vshrl.u32 %v140, 7
    %v142 = vsub.s32 %v139, %v141
    %v143 = vrot.slane %v76, %v142
    %v144 = vadd.s32 %v139, 4294967288
    %v145 = vlaneseq
    %v146 = vshrl.u32 %v145, 7
    %v147 = vsub.s32 %v144, %v146
    %v148 = vrot.slane %v79, %v147
    %vm149 = vcmask 130112
    %v150 = vsel %vm149, %v148, %v143
    %v151 = vadd.s32 %v139, 4294967280
    %v152 = vlaneseq
    %v153 = vshrl.u32 %v152, 7
    %v154 = vsub.s32 %v151, %v153
    %v155 = vrot.slane %v82, %v154
    %vm156 = vcmask 195712
    %v157 = vsel %vm156, %v155, %v150
    %v158 = vadd.s32 %v139, 4294967272
    %v159 = vlaneseq
    %v160 = vshrl.u32 %v159, 7
    %v161 = vsub.s32 %v158, %v160
    %v162 = vrot.slane %v85, %v161
    %vm163 = vcmask 261312
    %v164 = vsel %vm163, %v162, %v157
    %v165 = vadd.s32 %v139, 4294967264
    %v166 = vlaneseq
    %v167 = vshrl.u32 %v166, 7
    %v168 = vsub.s32 %v165, %v167
    %v169 = vrot.slane %v88, %v168
    %vm170 = vcmask 326912
    %v171 = vsel %vm170, %v169, %v164
    %v172 = vadd.s32 %v139, 4294967256
    %v173 = vlaneseq
    %v174 = vshrl.u32 %v173, 7
    %v175 = vsub.s32 %v172, %v174
    %v176 = vrot.slane %v91, %v175
    %vm177 = vcmask 392512
    %v178 = vsel %vm177, %v176, %v171
    %v179 = vadd.s32 %v139, 4294967248
    %v180 = vlaneseq
    %v181 = vshrl.u32 %v180, 7
    %v182 = vsub.s32 %v179, %v181
    %v183 = vrot.slane %v94, %v182
    %vm184 = vcmask 458112
    %v185 = vsel %vm184, %v183, %v178
    %v186 = vadd.s32 %v139, 4294967240
    %v187 = vlaneseq
    %v188 = vshrl.u32 %v187, 7
    %v189 = vsub.s32 %v186, %v188
    %v190 = vrot.slane %v97, %v189
    %vm191 = vcmask 523712
    %v192 = vsel %vm191, %v190, %v185
    %v193 = vlaneseq
    %v194 = vshrl.u32 %v193, 7
    %v195 = vsub.s32 %v139, %v194
    %v196 = vrot.slane %v100, %v195
    %v197 = vlaneseq
    %v198 = vshrl.u32 %v197, 7
    %v199 = vsub.s32 %v144, %v198
    %v200 = vrot.slane %v103, %v199
    %v201 = vsel %vm149, %v200, %v196
    %v202 = vlaneseq
    %v203 = vshrl.u32 %v202, 7
    %v204 = vsub.s32 %v151, %v203
    %v205 = vrot.slane %v106, %v204
    %v206 = vsel %vm156, %v205, %v201
    %v207 = vlaneseq
    %v208 = vshrl.u32 %v207, 7
    %v209 = vsub.s32 %v158, %v208
    %v210 = vrot.slane %v109, %v209
    %v211 = vsel %vm163, %v210, %v206
    %v212 = vlaneseq
    %v213 = vshrl.u32 %v212, 7
    %v214 = vsub.s32 %v165, %v213
    %v215 = vrot.slane %v112, %v214
    %v216 = vsel %vm170, %v215, %v211
    %v217 = vlaneseq
    %v218 = vshrl.u32 %v217, 7
    %v219 = vsub.s32 %v172, %v218
    %v220 = vrot.slane %v115, %v219
    %v221 = vsel %vm177, %v220, %v216
    %v222 = vlaneseq
    %v223 = vshrl.u32 %v222, 7
    %v224 = vsub.s32 %v179, %v223
    %v225 = vrot.slane %v118, %v224
    %v226 = vsel %vm184, %v225, %v221
    %v227 = vlaneseq
    %v228 = vshrl.u32 %v227, 7
    %v229 = vsub.s32 %v186, %v228
    %v230 = vrot.slane %v121, %v229
    %v231 = vsel %vm191, %v230, %v226
    %vm232 = vcmask 1041409
    %v233 = vsel %vm232, %v231, %v192
    %v235 = vadd.f32 %v41, %v233
    %vm236 = vcmask 517120
    %237 = vst.msk [vmem:[#allocation2] sm:$0x3] %vm236, %v235
    // Predicated region
    $region30: #{tpu_custom_call.1} parent=1 // pred_check
      %p238 = pneg %p35
    $region31: #{tpu_custom_call.1} parent=1 // pred_check_branch
      %240 = sbr.rel (%p238) target = $region33
    $region32: #{tpu_custom_call.1} parent=1 // pred_region
      %v241 = vld [vmem:[#allocation2] sm:$0x3]
      %v242 = vmul.f32 %v241, 0.00390625
      %v243 = vld [vmem:[%s1] sm:$0xff]
      %v244 = vld [vmem:[%s1 + $0x8] sm:$0xff]
      %v245 = vld [vmem:[%s1 + $0x10] sm:$0xff]
      %v246 = vld [vmem:[%s1 + $0x18] sm:$0xff]
      %v247 = vld [vmem:[%s1 + $0x20] sm:$0xff]
      %v248 = vld [vmem:[%s1 + $0x28] sm:$0xff]
      %v249 = vld [vmem:[%s1 + $0x30] sm:$0xff]
      %v250 = vld [vmem:[%s1 + $0x38] sm:$0xff]
      %v251 = vld [vmem:[%s2] sm:$0x1]
      %v253 = vlaneseq
      %v254 = vshrl.u32 %v253, 7
      %v255 = vsub.s32 0, %v254
      %v256 = vrot.slane %v251, %v255
      %vm258 = vcmask 523264
      %v260 = vsel %vm258, %v242, 0
      %262 = vmatprep.subr.mxu0 0.0
      %263 = vmatpush1.msra.mxu0 0.0
      %264 = vmatprep.subr.mxu0 0.0
      %265 = vmatpush1.msra.mxu0 0.0
      %266 = vmatprep.subr.mxu0 0.0
      %267 = vmatpush1.msra.mxu0 0.0
      %268 = vmatprep.subr.mxu0 0.0
      %269 = vmatpush1.msra.mxu0 0.0
      %270 = vmatprep.subr.mxu0 0.0
      %271 = vmatpush1.msra.mxu0 0.0
      %272 = vmatprep.subr.mxu0 0.0
      %273 = vmatpush1.msra.mxu0 0.0
      %274 = vmatprep.subr.mxu0 0.0
      %275 = vmatpush1.msra.mxu0 0.0
      %276 = vmatprep.subr.mxu0 0.0
      %277 = vmatpush1.msra.mxu0 0.0
      %278 = vmatprep.subr.mxu0 0.0
      %279 = vmatpush1.msra.mxu0 %v250
      %280 = vmatprep.subr.mxu0 0.0
      %281 = vmatpush1.msra.mxu0 %v249
      %282 = vmatprep.subr.mxu0 0.0
      %283 = vmatpush1.msra.mxu0 %v248
      %284 = vmatprep.subr.mxu0 0.0
      %285 = vmatpush1.msra.mxu0 %v247
      %286 = vmatprep.subr.mxu0 0.0
      %287 = vmatpush1.msra.mxu0 %v246
      %288 = vmatprep.subr.mxu0 0.0
      %289 = vmatpush1.msra.mxu0 %v245
      %290 = vmatprep.subr.mxu0 0.0
      %291 = vmatpush1.msra.mxu0 %v244
      %292 = vmatprep.subr.mxu0 0.0
      %293 = vmatpush1.msra.mxu0 %v243
      %294 = vmatprep.subr.mxu0 0.0
      %295 = vmatpush2.msra.mxu0 0.0
      %296 = vmatprep.subr.mxu0 0.0
      %297 = vmatpush2.msra.mxu0 0.0
      %298 = vmatprep.subr.mxu0 0.0
      %299 = vmatpush2.msra.mxu0 0.0
      %300 = vmatprep.subr.mxu0 0.0
      %301 = vmatpush2.msra.mxu0 0.0
      %302 = vmatprep.subr.mxu0 0.0
      %303 = vmatpush2.msra.mxu0 0.0
      %304 = vmatprep.subr.mxu0 0.0
      %305 = vmatpush2.msra.mxu0 0.0
      %306 = vmatprep.subr.mxu0 0.0
      %307 = vmatpush2.msra.mxu0 0.0
      %308 = vmatprep.subr.mxu0 0.0
      %309 = vmatpush2.msra.mxu0 0.0
      %310 = vmatprep.subr.mxu0 0.0
      %311 = vmatpush2.msra.mxu0 0.0
      %312 = vmatprep.subr.mxu0 0.0
      %313 = vmatpush2.msra.mxu0 0.0
      %314 = vmatprep.subr.mxu0 0.0
      %315 = vmatpush2.msra.mxu0 0.0
      %316 = vmatprep.subr.mxu0 0.0
      %317 = vmatpush2.msra.mxu0 0.0
      %318 = vmatprep.subr.mxu0 0.0
      %319 = vmatpush2.msra.mxu0 0.0
      %320 = vmatprep.subr.mxu0 0.0
      %321 = vmatpush2.msra.mxu0 0.0
      %322 = vmatprep.subr.mxu0 0.0
      %323 = vmatpush2.msra.mxu0 0.0
      %324 = vmatprep.subr.mxu0 0.0
      %325 = vmatpush2.msra.mxu0 0.0
      %326 = vmatprep.mubr.f32.mxu0 0.0
      %327 = vmatmul.mubr.f32.gmra.mxu0 %v260
      %v328 = vpop.f32.mrf.mxu0
      %v329 = vadd.f32 %v256, %v328
      %v330 = vpop.f32.mrf.mxu0
      %331 = vdwg.mxu0
      %v332 = vmax.f32 %v329, 0.0
      %v333 = vld [vmem:[%s3] sm:$0xf]
      %v334 = vld [vmem:[%s4] sm:$0x1]
      %v336 = vlaneseq
      %v337 = vshrl.u32 %v336, 7
      %v338 = vsub.s32 0, %v337
      %v339 = vrot.slane %v334, %v338
      %vm341 = vcmask 31744
      %v343 = vsel %vm341, %v332, 0
      %vm345 = vcmask 1043456
      %v347 = vsel %vm345, %v333, 0
      %349 = vmatprep.subr.mxu0 0.0
      %350 = vmatpush1.msra.mxu0 0.0
      %351 = vmatprep.subr.mxu0 0.0
      %352 = vmatpush1.msra.mxu0 0.0
      %353 = vmatprep.subr.mxu0 0.0
      %354 = vmatpush1.msra.mxu0 0.0
      %355 = vmatprep.subr.mxu0 0.0
      %356 = vmatpush1.msra.mxu0 0.0
      %357 = vmatprep.subr.mxu0 0.0
      %358 = vmatpush1.msra.mxu0 0.0
      %359 = vmatprep.subr.mxu0 0.0
      %360 = vmatpush1.msra.mxu0 0.0
      %361 = vmatprep.subr.mxu0 0.0
      %362 = vmatpush1.msra.mxu0 0.0
      %363 = vmatprep.subr.mxu0 0.0
      %364 = vmatpush1.msra.mxu0 0.0
      %365 = vmatprep.subr.mxu0 0.0
      %366 = vmatpush1.msra.mxu0 0.0
      %367 = vmatprep.subr.mxu0 0.0
      %368 = vmatpush1.msra.mxu0 0.0
      %369 = vmatprep.subr.mxu0 0.0
      %370 = vmatpush1.msra.mxu0 0.0
      %371 = vmatprep.subr.mxu0 0.0
      %372 = vmatpush1.msra.mxu0 0.0
      %373 = vmatprep.subr.mxu0 0.0
      %374 = vmatpush1.msra.mxu0 0.0
      %375 = vmatprep.subr.mxu0 0.0
      %376 = vmatpush1.msra.mxu0 0.0
      %377 = vmatprep.subr.mxu0 0.0
      %378 = vmatpush1.msra.mxu0 0.0
      %379 = vmatprep.subr.mxu0 0.0
      %380 = vmatpush1.msra.mxu0 %v347
      %381 = vmatprep.subr.mxu0 0.0
      %382 = vmatpush2.msra.mxu0 0.0
      %383 = vmatprep.subr.mxu0 0.0
      %384 = vmatpush2.msra.mxu0 0.0
      %385 = vmatprep.subr.mxu0 0.0
      %386 = vmatpush2.msra.mxu0 0.0
      %387 = vmatprep.subr.mxu0 0.0
      %388 = vmatpush2.msra.mxu0 0.0
      %389 = vmatprep.subr.mxu0 0.0
      %390 = vmatpush2.msra.mxu0 0.0
      %391 = vmatprep.subr.mxu0 0.0
      %392 = vmatpush2.msra.mxu0 0.0
      %393 = vmatprep.subr.mxu0 0.0
      %394 = vmatpush2.msra.mxu0 0.0
      %395 = vmatprep.subr.mxu0 0.0
      %396 = vmatpush2.msra.mxu0 0.0
      %397 = vmatprep.subr.mxu0 0.0
      %398 = vmatpush2.msra.mxu0 0.0
      %399 = vmatprep.subr.mxu0 0.0
      %400 = vmatpush2.msra.mxu0 0.0
      %401 = vmatprep.subr.mxu0 0.0
      %402 = vmatpush2.msra.mxu0 0.0
      %403 = vmatprep.subr.mxu0 0.0
      %404 = vmatpush2.msra.mxu0 0.0
      %405 = vmatprep.subr.mxu0 0.0
      %406 = vmatpush2.msra.mxu0 0.0
      %407 = vmatprep.subr.mxu0 0.0
      %408 = vmatpush2.msra.mxu0 0.0
      %409 = vmatprep.subr.mxu0 0.0
      %410 = vmatpush2.msra.mxu0 0.0
      %411 = vmatprep.subr.mxu0 0.0
      %412 = vmatpush2.msra.mxu0 0.0
      %413 = vmatprep.mubr.f32.mxu0 0.0
      %414 = vmatmul.mubr.f32.gmra.mxu0 %v343
      %v415 = vpop.f32.mrf.mxu0
      %v416 = vadd.f32 %v339, %v415
      %v417 = vpop.f32.mrf.mxu0
      %418 = vdwg.mxu0
      %v419 = vsub.f32 0.0, %v416
      %v420 = vmul.f32 %v419, 1.442695
      %v421 = vpow.pop %v420
      %v422 = vadd.f32 %v421, 1.0
      %v423 = vrcp.pop %v422
      %v424 = vmul.f32 1.0, %v423
      %425 = vst.msk [vmem:[#allocation6] sm:$0x3] %vm236, %v424
    $region33: #{tpu_custom_call.1} parent=1 // pred_fallthru
      _
    // Predicated region
    $region34: #{tpu_custom_call.1} parent=1 // pred_check
      _
    $region35: #{tpu_custom_call.1} parent=1 // pred_check_branch
      %427 = sbr.rel (0) target = $region37
    $region36: #{tpu_custom_call.1} parent=1 // pred_region
      %s429 = ssub.s32 32, 32
      %430 = vsyncadd [#allocation5], %s429
      %s432 = sshll.u32 [#allocation6], 4
      %s433 = int_to_ptr.vmem [resolvable:$true] %s432
      %435 = dma.vmem_to_hbm [thread:$0]  %s433, 32, %s5, [#allocation5]
    $region37: #{tpu_custom_call.1} parent=1 // pred_fallthru
      _
    // Predicated region
    $region38: #{tpu_custom_call.1} parent=1 // pred_check
      _
    $region39: #{tpu_custom_call.1} parent=1 // pred_check_branch
      %437 = sbr.rel (0) target = $region41
    $region40: #{tpu_custom_call.1} parent=1 // pred_region
      %438 = dma.done [#allocation5], 32
    $region41: #{tpu_custom_call.1} parent=1 // pred_fallthru
      _
    %439 = vsyncpa [#allocation4], 1
    %440 = vsyncpa [#allocation5], 1

</llo_original>
